<compile_context>
chip_gen: v5e
topology: v5e:2x2
jax: 0.10.0
libtpu: 0.0.40
codegen_flags: <defaults>
</compile_context>

<pallas_src>
import functools

import jax
import jax.numpy as jnp
from jax.experimental import pallas as pl
from jax.experimental.pallas import tpu as pltpu

LANE = 128
SUBLANE = 8


def _round_up(x, m):
    return (x + m - 1) // m * m


def _mlp_kernel(x_ref, w1_ref, b1_ref, w2_ref, b2_ref, w3_ref, b3_ref, o_ref):
    # fc1 + ReLU  (bf16 operands, f32 accumulate; bias/ReLU in f32 on the VPU)
    h1 = jnp.dot(x_ref[...], w1_ref[...],
                 preferred_element_type=jnp.float32) + b1_ref[...]
    h1 = jnp.maximum(h1, 0.0)
    # fc2 + ReLU
    h2 = jnp.dot(h1.astype(jnp.bfloat16), w2_ref[...],
                 preferred_element_type=jnp.float32) + b2_ref[...]
    h2 = jnp.maximum(h2, 0.0)
    # fc3_action (no activation) -> lane-dense (TB, 128*k) slab, unmasked store
    o_ref[...] = (
        jnp.dot(h2.astype(jnp.bfloat16), w3_ref[...],
                preferred_element_type=jnp.float32) + b3_ref[...]
    ).astype(o_ref.dtype)


@functools.partial(jax.jit, static_argnames=("block_b",))
def _policy_forward_2d(state_features, w1, b1, w2, b2, w3, b3, *, block_b=512):
    B, S = state_features.shape
    H1 = w1.shape[1]
    H2 = w2.shape[1]
    A = w3.shape[1]

    # --- pad action dim to a full 128-lane slab (unmasked stores, full MXU N) ---
    A_pad = _round_up(A, LANE)
    w3_p = jnp.pad(w3, ((0, 0), (0, A_pad - A)))
    b3_p = jnp.pad(b3, ((0, 0), (0, A_pad - A)))

    # --- batch tile: multiple of 8 sublanes, no larger than the (padded) batch ---
    TB = min(block_b, _round_up(B, SUBLANE))
    B_pad = _round_up(B, TB)
    x_p = jnp.pad(state_features, ((0, B_pad - B), (0, 0)))

    # bf16 matmul operands (halves DMA bytes, native MXU rate); biases stay f32.
    x_bf = x_p.astype(jnp.bfloat16)
    w1_bf = w1.astype(jnp.bfloat16)
    w2_bf = w2.astype(jnp.bfloat16)
    w3_bf = w3_p.astype(jnp.bfloat16)
    b1_f = b1.astype(jnp.float32)
    b2_f = b2.astype(jnp.float32)
    b3_f = b3_p.astype(jnp.float32)

    grid = (B_pad // TB,)

    def resident(shape):
        # Same block every grid step -> DMA'd once, stays resident in VMEM.
        return pl.BlockSpec(shape, lambda i: tuple(0 for _ in shape))

    flops = 2 * B_pad * (S * H1 + H1 * H2 + H2 * A_pad)
    bytes_accessed = (
        x_bf.size * 2
        + w1_bf.size * 2 + w2_bf.size * 2 + w3_bf.size * 2
        + b1_f.size * 4 + b2_f.size * 4 + b3_f.size * 4
        + B_pad * A_pad * 4
    )

    out = pl.pallas_call(
        _mlp_kernel,
        out_shape=jax.ShapeDtypeStruct((B_pad, A_pad), jnp.float32),
        grid=grid,
        in_specs=[
            pl.BlockSpec((TB, S), lambda i: (i, 0)),   # activation stream (pipelined)
            resident(w1_bf.shape),
            resident(b1_f.shape),
            resident(w2_bf.shape),
            resident(b2_f.shape),
            resident(w3_bf.shape),
            resident(b3_f.shape),
        ],
        out_specs=pl.BlockSpec((TB, A_pad), lambda i: (i, 0)),
        compiler_params=pltpu.CompilerParams(
            dimension_semantics=("parallel",),       # megacore on v7x
            vmem_limit_bytes=48 * 1024 * 1024,       # <= physical VMEM on all chips
        ),
        cost_estimate=pl.CostEstimate(
            flops=flops, transcendentals=0, bytes_accessed=bytes_accessed),
    )(x_bf, w1_bf, b1_f, w2_bf, b2_f, w3_bf, b3_f)

    return out[:B, :A]


def policy_forward(state_features, w1, b1, w2, b2, w3, b3, *, block_b=512):
    """Equivalent of SimplePolicyNetwork.forward (handles 1-D input like the module)."""
    squeeze = state_features.ndim == 1
    if squeeze:
        state_features = state_features[None, :]
    out = _policy_forward_2d(state_features, w1, b1, w2, b2, w3, b3,
                             block_b=block_b)
    return out[0] if squeeze else out


def init_params(key, state_dim, action_space_size, hidden_dim=128):
    """Deterministic init mimicking nn.Linear's U(-1/sqrt(fan_in), 1/sqrt(fan_in))."""
    dims = [
        (state_dim, hidden_dim),
        (hidden_dim, hidden_dim // 2),
        (hidden_dim // 2, action_space_size),
    ]
    params = []
    for (fan_in, fan_out) in dims:
        key, kw, kb = jax.random.split(key, 3)
        bound = 1.0 / jnp.sqrt(jnp.float32(fan_in))
        w = jax.random.uniform(kw, (fan_in, fan_out), jnp.float32, -bound, bound)
        b = jax.random.uniform(kb, (1, fan_out), jnp.float32, -bound, bound)
        params += [w, b]
    return params


def reference_forward(x, w1, b1, w2, b2, w3, b3):
    h1 = jnp.maximum(x @ w1 + b1, 0.0)
    h2 = jnp.maximum(h1 @ w2 + b2, 0.0)
    return h2 @ w3 + b3


if __name__ == "__main__":
    key = jax.random.PRNGKey(0)
    batch = 2
    state_dim = 16
    hidden_dim = 32
    action_space_size = 8

    key, kx = jax.random.split(key)
    state_features = jax.random.normal(kx, (batch, state_dim), jnp.float32)

    params = init_params(key, state_dim, action_space_size, hidden_dim)

    out = policy_forward(state_features, *params)
    out = jax.block_until_ready(out)

    ref = reference_forward(state_features, *params)
    assert out.shape == (batch, action_space_size)
    # bf16 matmul operands with f32 accumulation -> relaxed tolerance vs f32 reference.
    assert jnp.allclose(out, ref, atol=5e-2, rtol=5e-2), "mismatch vs reference"

    print("KERNEL_OK")
</pallas_src>

<mosaic_0001>
module attributes {stable_mosaic.version = 11 : i64} {
  func.func @_mlp_kernel(%arg0: i32, %arg1: memref<8x16xbf16, #tpu.memory_space<vmem>>, %arg2: memref<16x32xbf16, #tpu.memory_space<vmem>>, %arg3: memref<1x32xf32, #tpu.memory_space<vmem>>, %arg4: memref<32x16xbf16, #tpu.memory_space<vmem>>, %arg5: memref<1x16xf32, #tpu.memory_space<vmem>>, %arg6: memref<16x128xbf16, #tpu.memory_space<vmem>>, %arg7: memref<1x128xf32, #tpu.memory_space<vmem>>, %arg8: memref<8x128xf32, #tpu.memory_space<vmem>>) attributes {dimension_semantics = [#tpu.dimension_semantics<parallel>], iteration_bounds = array<i64: 1>, scalar_prefetch = 0 : i64, scratch_operands = 0 : i64, tpu.core_type = #tpu.core_type<tc>, window_params = [{transform_indices = @transform_0, window_bounds = array<i64: 8, 16>}, {pipeline_mode = #tpu.pipeline_mode<synchronous>, transform_indices = @transform_1, window_bounds = array<i64: 16, 32>}, {pipeline_mode = #tpu.pipeline_mode<synchronous>, transform_indices = @transform_2, window_bounds = array<i64: 1, 32>}, {pipeline_mode = #tpu.pipeline_mode<synchronous>, transform_indices = @transform_3, window_bounds = array<i64: 32, 16>}, {pipeline_mode = #tpu.pipeline_mode<synchronous>, transform_indices = @transform_4, window_bounds = array<i64: 1, 16>}, {pipeline_mode = #tpu.pipeline_mode<synchronous>, transform_indices = @transform_5, window_bounds = array<i64: 16, 128>}, {pipeline_mode = #tpu.pipeline_mode<synchronous>, transform_indices = @transform_6, window_bounds = array<i64: 1, 128>}, {transform_indices = @transform_7, window_bounds = array<i64: 8, 128>}]} {
    %c0 = arith.constant 0 : index
    %c0_0 = arith.constant 0 : index
    %0 = vector.load %arg1[%c0, %c0_0] : memref<8x16xbf16, #tpu.memory_space<vmem>>, vector<8x16xbf16>
    %c0_1 = arith.constant 0 : index
    %c0_2 = arith.constant 0 : index
    %1 = vector.load %arg2[%c0_1, %c0_2] : memref<16x32xbf16, #tpu.memory_space<vmem>>, vector<16x32xbf16>
    %cst = arith.constant dense<0.000000e+00> : vector<8x32xf32>
    %2 = tpu.matmul %0, %1, %cst {dimension_numbers = #tpu.dot_dimension_numbers<[1], [0], [0], [1], [0, 0, 1, 1], [], []>} : vector<8x16xbf16>, vector<16x32xbf16>, vector<8x32xf32> -> vector<8x32xf32>
    %c0_3 = arith.constant 0 : index
    %c0_4 = arith.constant 0 : index
    %3 = vector.load %arg3[%c0_3, %c0_4] : memref<1x32xf32, #tpu.memory_space<vmem>>, vector<1x32xf32>
    %4 = vector.broadcast %3 : vector<1x32xf32> to vector<8x32xf32>
    %5 = arith.addf %2, %4 : vector<8x32xf32>
    %cst_5 = arith.constant 0.000000e+00 : f32
    %6 = vector.broadcast %cst_5 : f32 to vector<8x32xf32>
    %7 = arith.maximumf %5, %6 : vector<8x32xf32>
    %8 = arith.truncf %7 : vector<8x32xf32> to vector<8x32xbf16>
    %c0_6 = arith.constant 0 : index
    %c0_7 = arith.constant 0 : index
    %9 = vector.load %arg4[%c0_6, %c0_7] : memref<32x16xbf16, #tpu.memory_space<vmem>>, vector<32x16xbf16>
    %cst_8 = arith.constant dense<0.000000e+00> : vector<8x16xf32>
    %10 = tpu.matmul %8, %9, %cst_8 {dimension_numbers = #tpu.dot_dimension_numbers<[1], [0], [0], [1], [0, 0, 1, 1], [], []>} : vector<8x32xbf16>, vector<32x16xbf16>, vector<8x16xf32> -> vector<8x16xf32>
    %c0_9 = arith.constant 0 : index
    %c0_10 = arith.constant 0 : index
    %11 = vector.load %arg5[%c0_9, %c0_10] : memref<1x16xf32, #tpu.memory_space<vmem>>, vector<1x16xf32>
    %12 = vector.broadcast %11 : vector<1x16xf32> to vector<8x16xf32>
    %13 = arith.addf %10, %12 : vector<8x16xf32>
    %cst_11 = arith.constant 0.000000e+00 : f32
    %14 = vector.broadcast %cst_11 : f32 to vector<8x16xf32>
    %15 = arith.maximumf %13, %14 : vector<8x16xf32>
    %16 = arith.truncf %15 : vector<8x16xf32> to vector<8x16xbf16>
    %c0_12 = arith.constant 0 : index
    %c0_13 = arith.constant 0 : index
    %17 = vector.load %arg6[%c0_12, %c0_13] : memref<16x128xbf16, #tpu.memory_space<vmem>>, vector<16x128xbf16>
    %cst_14 = arith.constant dense<0.000000e+00> : vector<8x128xf32>
    %18 = tpu.matmul %16, %17, %cst_14 {dimension_numbers = #tpu.dot_dimension_numbers<[1], [0], [0], [1], [0, 0, 1, 1], [], []>} : vector<8x16xbf16>, vector<16x128xbf16>, vector<8x128xf32> -> vector<8x128xf32>
    %c0_15 = arith.constant 0 : index
    %c0_16 = arith.constant 0 : index
    %19 = vector.load %arg7[%c0_15, %c0_16] : memref<1x128xf32, #tpu.memory_space<vmem>>, vector<1x128xf32>
    %20 = vector.broadcast %19 : vector<1x128xf32> to vector<8x128xf32>
    %21 = arith.addf %18, %20 : vector<8x128xf32>
    %c0_17 = arith.constant 0 : index
    %c0_18 = arith.constant 0 : index
    %22 = vector.load %arg8[%c0_17, %c0_18] : memref<8x128xf32, #tpu.memory_space<vmem>>, vector<8x128xf32>
    tpu.vector_store %arg8[%c0_17, %c0_18], %21 {strides = array<i32>} : memref<8x128xf32, #tpu.memory_space<vmem>>, vector<8x128xf32>,
    return
  }
  func.func @transform_0(%arg0: i32) -> (i32, i32) {
    %c0_i32 = arith.constant 0 : i32
    %c0_i32_0 = arith.constant 0 : i32
    return %arg0, %c0_i32 : i32, i32
  }
  func.func @transform_1(%arg0: i32) -> (i32, i32) {
    %c0_i32 = arith.constant 0 : i32
    %c0_i32_0 = arith.constant 0 : i32
    %c0_i32_1 = arith.constant 0 : i32
    return %c0_i32, %c0_i32_0 : i32, i32
  }
  func.func @transform_2(%arg0: i32) -> (i32, i32) {
    %c0_i32 = arith.constant 0 : i32
    %c0_i32_0 = arith.constant 0 : i32
    %c0_i32_1 = arith.constant 0 : i32
    return %c0_i32, %c0_i32_0 : i32, i32
  }
  func.func @transform_3(%arg0: i32) -> (i32, i32) {
    %c0_i32 = arith.constant 0 : i32
    %c0_i32_0 = arith.constant 0 : i32
    %c0_i32_1 = arith.constant 0 : i32
    return %c0_i32, %c0_i32_0 : i32, i32
  }
  func.func @transform_4(%arg0: i32) -> (i32, i32) {
    %c0_i32 = arith.constant 0 : i32
    %c0_i32_0 = arith.constant 0 : i32
    %c0_i32_1 = arith.constant 0 : i32
    return %c0_i32, %c0_i32_0 : i32, i32
  }
  func.func @transform_5(%arg0: i32) -> (i32, i32) {
    %c0_i32 = arith.constant 0 : i32
    %c0_i32_0 = arith.constant 0 : i32
    %c0_i32_1 = arith.constant 0 : i32
    return %c0_i32, %c0_i32_0 : i32, i32
  }
  func.func @transform_6(%arg0: i32) -> (i32, i32) {
    %c0_i32 = arith.constant 0 : i32
    %c0_i32_0 = arith.constant 0 : i32
    %c0_i32_1 = arith.constant 0 : i32
    return %c0_i32, %c0_i32_0 : i32, i32
  }
  func.func @transform_7(%arg0: i32) -> (i32, i32) {
    %c0_i32 = arith.constant 0 : i32
    %c0_i32_0 = arith.constant 0 : i32
    return %arg0, %c0_i32 : i32, i32
  }
}

</mosaic_0001>

<llo_original>
// kernel: _policy_forward_2d.1
$region0: #{_policy_forward_2d.1}
  #allocation0 [shape = 'u32[]', space=smem, size = 0x4, offset = 0x4, fixed_abs, tag = 'smem constant byte address 0x4 - core index']
  #allocation1 [shape = 'u32[72,128]{1,0:T(1,128)}', space=vmem, size = 0x9000, scoped, tag = 'internal scratch']
  %s0 = inlined_call_operand.vmem [shape: bf16[8,16], index: 0, kind: input, shape index: {}]
  %s1 = inlined_call_operand.vmem [shape: bf16[16,32], index: 1, kind: input, shape index: {}]
  %s2 = inlined_call_operand.vmem [shape: f32[1,32], index: 2, kind: input, shape index: {}]
  %s3 = inlined_call_operand.vmem [shape: bf16[32,16], index: 3, kind: input, shape index: {}]
  %s4 = inlined_call_operand.vmem [shape: f32[1,16], index: 4, kind: input, shape index: {}]
  %s5 = inlined_call_operand.vmem [shape: bf16[16,128], index: 5, kind: input, shape index: {}]
  %s6 = inlined_call_operand.vmem [shape: f32[1,128], index: 6, kind: input, shape index: {}]
  %s7 = inlined_call_operand.vmem [shape: f32[8,128], index: 7, kind: output, shape index: {}]
  %s8 = sld [smem:[#allocation0]]
  $region38: #{_policy_forward_2d.1} parent=0
    _
  %s10 = ssub.s32 1, %s8
  %s11 = scalar_select 0, %s10, %s8
  // Predicated region
  $region2: #{_policy_forward_2d.1} parent=0 // pred_check
    _
  $region3: #{_policy_forward_2d.1} parent=0 // pred_check_branch
    %13 = sbr.rel (0) target = $region5
  $region4: #{_policy_forward_2d.1} parent=0 // pred_region
    _
  $region5: #{_policy_forward_2d.1} parent=0 // pred_fallthru
    _
  // Predicated region
  $region6: #{_policy_forward_2d.1} parent=0 // pred_check
    _
  $region7: #{_policy_forward_2d.1} parent=0 // pred_check_branch
    %15 = sbr.rel (0) target = $region9
  $region8: #{_policy_forward_2d.1} parent=0 // pred_region
    _
  $region9: #{_policy_forward_2d.1} parent=0 // pred_fallthru
    _
  // Predicated region
  $region10: #{_policy_forward_2d.1} parent=0 // pred_check
    _
  $region11: #{_policy_forward_2d.1} parent=0 // pred_check_branch
    %17 = sbr.rel (0) target = $region13
  $region12: #{_policy_forward_2d.1} parent=0 // pred_region
    _
  $region13: #{_policy_forward_2d.1} parent=0 // pred_fallthru
    _
  // Predicated region
  $region14: #{_policy_forward_2d.1} parent=0 // pred_check
    _
  $region15: #{_policy_forward_2d.1} parent=0 // pred_check_branch
    %19 = sbr.rel (0) target = $region17
  $region16: #{_policy_forward_2d.1} parent=0 // pred_region
    _
  $region17: #{_policy_forward_2d.1} parent=0 // pred_fallthru
    _
  // Predicated region
  $region18: #{_policy_forward_2d.1} parent=0 // pred_check
    _
  $region19: #{_policy_forward_2d.1} parent=0 // pred_check_branch
    %21 = sbr.rel (0) target = $region21
  $region20: #{_policy_forward_2d.1} parent=0 // pred_region
    _
  $region21: #{_policy_forward_2d.1} parent=0 // pred_fallthru
    _
  // Predicated region
  $region22: #{_policy_forward_2d.1} parent=0 // pred_check
    _
  $region23: #{_policy_forward_2d.1} parent=0 // pred_check_branch
    %23 = sbr.rel (0) target = $region25
  $region24: #{_policy_forward_2d.1} parent=0 // pred_region
    _
  $region25: #{_policy_forward_2d.1} parent=0 // pred_fallthru
    _
  // Predicated region
  $region26: #{_policy_forward_2d.1} parent=0 // pred_check
    _
  $region27: #{_policy_forward_2d.1} parent=0 // pred_check_branch
    %25 = sbr.rel (0) target = $region29
  $region28: #{_policy_forward_2d.1} parent=0 // pred_region
    _
  $region29: #{_policy_forward_2d.1} parent=0 // pred_fallthru
    _
  %v27 = vld [vmem:[%s0] sm:$0xf]
  %v28 = vld [vmem:[%s1] sm:$0xf]
  %v29 = vld [vmem:[%s1 + $0x4] sm:$0xf]
  %v30 = vld [vmem:[%s2] sm:$0x1]
  %v32 = vperm.slane %v30, 0
  %v36 = vunpack.c.l.b16 %v28
  %v37 = vunpack.c.l.b16 %v29
  %v38 = vpack.c.b16 %v37, %v36
  %vm40 = vcmask 130048
  %v42 = vsel %vm40, %v27, 0
  %44 = vmatpush.bf16.msra.mxu0 0
  %45 = vmatpush.bf16.msra.mxu0 0
  %46 = vmatpush.bf16.msra.mxu0 0
  %47 = vmatpush.bf16.msra.mxu0 0
  %48 = vmatpush.bf16.msra.mxu0 0
  %49 = vmatpush.bf16.msra.mxu0 0
  %50 = vmatpush.bf16.msra.mxu0 0
  %51 = vmatpush.bf16.msra.mxu0 %v38
  %52 = vmatmul.bf16.gmra.mxu0 %v42
  %v53 = vpop.f32.mrf.mxu0
  %v54 = vadd.f32 %v32, %v53
  %v55 = vpop.f32.mrf.mxu0
  %56 = vdwg.mxu0
  %v57 = vmax.f32 %v54, 0.0
  %v58 = vpack.c.bf16 %v57, %v57
  %v59 = vld [vmem:[%s3] sm:$0xf]
  %v60 = vld [vmem:[%s3 + $0x4] sm:$0xf]
  %v61 = vld [vmem:[%s3 + $0x8] sm:$0xf]
  %v62 = vld [vmem:[%s3 + $0xc] sm:$0xf]
  %v63 = vld [vmem:[%s4] sm:$0x1]
  %v65 = vperm.slane %v63, 0
  %v71 = vunpack.c.l.b16 %v59
  %v72 = vunpack.c.l.b16 %v60
  %v73 = vunpack.c.l.b16 %v61
  %v74 = vunpack.c.l.b16 %v62
  %v75 = vpack.c.b16 %v72, %v71
  %v76 = vpack.c.b16 %v74, %v73
  %vm79 = vcmask 261120
  %v81 = vsel %vm79, %v58, 0
  %83 = vmatpush.bf16.msra.mxu0 0
  %84 = vmatpush.bf16.msra.mxu0 0
  %85 = vmatpush.bf16.msra.mxu0 0
  %86 = vmatpush.bf16.msra.mxu0 0
  %87 = vmatpush.bf16.msra.mxu0 0
  %88 = vmatpush.bf16.msra.mxu0 0
  %89 = vmatpush.bf16.msra.mxu0 %v76
  %90 = vmatpush.bf16.msra.mxu0 %v75
  %91 = vmatmul.bf16.gmra.mxu0 %v81
  %v92 = vpop.f32.mrf.mxu0
  %v93 = vadd.f32 %v65, %v92
  %v94 = vpop.f32.mrf.mxu0
  %95 = vdwg.mxu0
  %v96 = vmax.f32 %v93, 0.0
  %v97 = vpack.c.bf16 %v96, %v96
  %v98 = vld [vmem:[%s5] sm:$0xf]
  %v99 = vld [vmem:[%s5 + $0x4] sm:$0xf]
  %v100 = vld [vmem:[%s6] sm:$0x1]
  %v102 = vperm.slane %v100, 0
  %v106 = vunpack.c.l.b16 %v98
  %v107 = vunpack.c.l.b16 %v99
  %v108 = vpack.c.b16 %v107, %v106
  %v111 = vsel %vm40, %v97, 0
  %113 = vmatpush.bf16.msra.mxu0 0
  %114 = vmatpush.bf16.msra.mxu0 0
  %115 = vmatpush.bf16.msra.mxu0 0
  %116 = vmatpush.bf16.msra.mxu0 0
  %117 = vmatpush.bf16.msra.mxu0 0
  %118 = vmatpush.bf16.msra.mxu0 0
  %119 = vmatpush.bf16.msra.mxu0 0
  %120 = vmatpush.bf16.msra.mxu0 %v108
  %121 = vmatmul.bf16.gmra.mxu0 %v111
  %v122 = vpop.f32.mrf.mxu0
  %v123 = vadd.f32 %v102, %v122
  %v124 = vpop.f32.mrf.mxu0
  %125 = vdwg.mxu0
  %126 = vst [vmem:[%s7] sm:$0xff] %v123
  // Predicated region
  $region30: #{_policy_forward_2d.1} parent=0 // pred_check
    _
  $region31: #{_policy_forward_2d.1} parent=0 // pred_check_branch
    %128 = sbr.rel (0) target = $region33
  $region32: #{_policy_forward_2d.1} parent=0 // pred_region
    _
  $region33: #{_policy_forward_2d.1} parent=0 // pred_fallthru
    _
  // Predicated region
  $region34: #{_policy_forward_2d.1} parent=0 // pred_check
    _
  $region35: #{_policy_forward_2d.1} parent=0 // pred_check_branch
    %130 = sbr.rel (0) target = $region37
  $region36: #{_policy_forward_2d.1} parent=0 // pred_region
    _
  $region37: #{_policy_forward_2d.1} parent=0 // pred_fallthru
    _

</llo_original>
